<compile_context>
chip_gen: v5e
topology: v5e:2x2
jax: 0.10.0
libtpu: 0.0.40
codegen_flags: <defaults>
</compile_context>

<pallas_src>
import numpy as np
import jax
import jax.numpy as jnp
from jax import lax
from jax.experimental import pallas as pl
from jax.experimental.pallas import tpu as pltpu


# ---------------------------------------------------------------------------
# Pallas kernel: RoIAlign pooling for one (channel-tile, ROI) grid step.
# ---------------------------------------------------------------------------
def _roi_align_kernel(lvl_ref, bidx_ref, at_ref, bt_ref, feat_ref, o_ref):
    """at_ref  : (PP, Hmax)       bf16  per-ROI y-weights (1/G^2 folded, zero-padded rows)
       bt_ref  : (PP, Wmax)       bf16  per-ROI x-weights (zero-padded rows)
       feat_ref: (tc*Hmax, Wmax)  bf16  (channel, row)-flattened feature slab
       o_ref   : (PP, tc*PP)      f32   (py, (c, px)) pooled block, lane-dense
    """
    del lvl_ref, bidx_ref                       # consumed by the index_maps only
    PP, Hmax = at_ref.shape
    tc = o_ref.shape[1] // PP

    at = at_ref[...]
    bt = bt_ref[...]
    f = feat_ref[...]                                              # (tc*Hmax, Wmax)

    # Stage 1 (contract W): one row-saturated MXU matmul, M = tc*Hmax.
    u = lax.dot_general(f, bt, (((1,), (1,)), ((), ())),
                        preferred_element_type=jnp.float32)        # ((c,h), px)

    # Re-tile the small f32 intermediate ((c,h), px) -> ((c,px), h):
    # leading-dim reshapes + one minor-dim swap; ~tc*Hmax*PP floats, cheap
    # next to stage 1 (Hmax is padded to a multiple of 8, PP == 8).
    u = u.reshape(tc, Hmax, PP)
    u = jnp.swapaxes(u, 1, 2)                                      # (tc, PP, Hmax)
    u = u.reshape(tc * PP, Hmax).astype(jnp.bfloat16)

    # Stage 2 (contract H): plain MXU matmul, M = tc*PP.
    out = lax.dot_general(u, at, (((1,), (1,)), ((), ())),
                          preferred_element_type=jnp.float32)      # ((c,px), py)

    # Lane-dense store: 2-D transpose of the tiny result -> (py, (c, px)).
    o_ref[...] = out.T


# ---------------------------------------------------------------------------
# Module-level glue (mirrors SingleRoIExtractor.forward)
# ---------------------------------------------------------------------------
def map_roi_levels(rois, num_levels, finest_scale):
    scale = jnp.sqrt((rois[:, 3] - rois[:, 1] + 1) * (rois[:, 4] - rois[:, 2] + 1))
    target = jnp.floor(jnp.log2(scale / finest_scale + 1e-6))
    return jnp.clip(target, 0, num_levels - 1).astype(jnp.int32)


def roi_rescale(rois, scale_factor):
    cx = (rois[:, 1] + rois[:, 3]) * 0.5
    cy = (rois[:, 2] + rois[:, 4]) * 0.5
    w = rois[:, 3] - rois[:, 1] + 1
    h = rois[:, 4] - rois[:, 2] + 1
    new_w = w * scale_factor
    new_h = h * scale_factor
    x1 = cx - new_w * 0.5 + 0.5
    x2 = cx + new_w * 0.5 - 0.5
    y1 = cy - new_h * 0.5 + 0.5
    y2 = cy + new_h * 0.5 - 0.5
    return jnp.stack((rois[:, 0], x1, y1, x2, y2), axis=-1)


def _build_axis_weights(start, bin_size, fdim, P, G, Dmax):
    """Separable RoIAlign weights along one axis -> (K, P, Dmax) f32.

    W[k, p, d] = sum_g valid(s) * max(0, 1 - |clip(s, 0, fdim-1) - d|),
    with s = start + bin*(p + (g + 0.5)/G)  (mmdet-v1 sampling grid).
    """
    p = jnp.arange(P, dtype=jnp.float32)
    g = (jnp.arange(G, dtype=jnp.float32) + 0.5) / G
    s = start[:, None, None] + bin_size[:, None, None] * (p[None, :, None] + g[None, None, :])
    valid = ((s >= -1.0) & (s <= fdim[:, None, None])).astype(jnp.float32)
    sc = jnp.clip(s, 0.0, fdim[:, None, None] - 1.0)
    d = jnp.arange(Dmax, dtype=jnp.float32)
    hat = jnp.maximum(0.0, 1.0 - jnp.abs(sc[..., None] - d[None, None, None, :]))
    return (valid[..., None] * hat).sum(axis=2)                    # (K, P, Dmax)


def _vmem_capacity_bytes(default=64 << 20):
    try:
        info = pltpu.get_tpu_info()
        cap = getattr(info, "vmem_capacity_bytes", None)
        if cap:
            return int(cap)
    except Exception:
        pass
    return default


def _channel_tile(C, Hmax, Wmax, vmem_cap):
    """Largest channel tile whose double-buffered bf16 slab fits ~40% of VMEM."""
    budget = int(vmem_cap * 0.40)
    cap = max(budget // (2 * Hmax * Wmax * 2), 8)
    if C <= cap:
        return C
    t = (min(cap, C) // 128) * 128
    while t >= 128:
        if C % t == 0:
            return t
        t -= 128
    # TODO(synk): C exceeds the VMEM-derived cap with no multiple-of-128
    # divisor; fall back to one tile (switch to windowed feature DMA instead).
    return C


class SingleRoIExtractorPallas:
    def __init__(self, roi_layer, out_channels, featmap_strides, finest_scale=56):
        assert roi_layer["type"] == "RoIAlign"
        self.out_size = int(roi_layer.get("out_size", 7))
        self.sample_num = int(roi_layer.get("sample_num", 2))
        assert self.sample_num > 0  # TODO(synk): adaptive sample_num==0 needs a dynamic sample grid
        self.out_channels = out_channels
        self.featmap_strides = tuple(featmap_strides)
        self.finest_scale = finest_scale

    @property
    def num_inputs(self):
        return len(self.featmap_strides)

    def __call__(self, feats, rois, roi_scale_factor=None):
        num_levels = len(feats)
        K = rois.shape[0]
        N, C = feats[0].shape[0], feats[0].shape[1]
        P, G = self.out_size, self.sample_num
        PP = -(-P // 8) * 8                      # pooled size padded to a sublane multiple
        rois = rois.astype(jnp.float32)

        if num_levels == 1:
            target_lvls = jnp.zeros((K,), jnp.int32)
        else:
            target_lvls = map_roi_levels(rois, num_levels, self.finest_scale)
        if roi_scale_factor is not None:
            rois = roi_rescale(rois, roi_scale_factor)
        batch_idx = rois[:, 0].astype(jnp.int32)

        # Sort ROIs by (level, batch): consecutive grid steps then hit the same
        # feature slab block index and Pallas skips the repeated slab DMA.
        order = jnp.argsort(target_lvls * N + batch_idx)
        inv_order = jnp.argsort(order)
        rois_s = rois[order]
        lvls_s = target_lvls[order]
        bidx_s = batch_idx[order]

        # Pad every level to (Hmax, Wmax), flatten (C, H) into rows and stack:
        # (L, N, C*Hmax, Wmax) bf16.  A (tc*Hmax, Wmax) row-block is the slab.
        # TODO(synk): for production shapes, fetch only the ROI's spatial window
        # from unpadded per-level maps (manual make_async_copy) instead of
        # padding every level to the largest one.
        hs = [f.shape[2] for f in feats]
        ws = [f.shape[3] for f in feats]
        Hmax = -(-max(hs) // 8) * 8
        Wmax = max(ws)
        padded = []
        for f in feats:
            fb = jnp.pad(f.astype(jnp.bfloat16),
                         ((0, 0), (0, 0), (0, Hmax - f.shape[2]), (0, Wmax - f.shape[3])))
            padded.append(fb.reshape(N, C * Hmax, Wmax))
        stacked = jnp.stack(padded, axis=0)                       # (L, N, C*Hmax, Wmax)

        # Per-ROI separable bilinear weights (lane-dense, bf16, sorted order).
        strides_arr = jnp.array(self.featmap_strides, jnp.float32)
        hs_arr = jnp.array(hs, jnp.float32)
        ws_arr = jnp.array(ws, jnp.float32)
        scale_s = 1.0 / strides_arr[lvls_s]
        x1, y1, x2, y2 = rois_s[:, 1], rois_s[:, 2], rois_s[:, 3], rois_s[:, 4]
        roi_start_w = x1 * scale_s
        roi_start_h = y1 * scale_s
        roi_w = jnp.maximum((x2 + 1.0) * scale_s - roi_start_w, 0.0)
        roi_h = jnp.maximum((y2 + 1.0) * scale_s - roi_start_h, 0.0)
        At = _build_axis_weights(roi_start_h, roi_h / P, hs_arr[lvls_s], P, G, Hmax)
        Bt = _build_axis_weights(roi_start_w, roi_w / P, ws_arr[lvls_s], P, G, Wmax)
        At = At * (1.0 / (G * G))                # fold the sample average once
        At = jnp.pad(At, ((0, 0), (0, PP - P), (0, 0))).astype(jnp.bfloat16)   # (K, PP, Hmax)
        Bt = jnp.pad(Bt, ((0, 0), (0, PP - P), (0, 0))).astype(jnp.bfloat16)   # (K, PP, Wmax)

        # Channel tile + VMEM limit derived from the physical VMEM size.
        vmem_cap = _vmem_capacity_bytes()
        tc = _channel_tile(C, Hmax, Wmax, vmem_cap)
        vmem_need = (2 * (tc * Hmax * Wmax * 2 + PP * (Hmax + Wmax) * 2 + PP * tc * PP * 4)
                     + 6 * tc * Hmax * PP * 4 + (2 << 20))
        vmem_limit = int(min(max(vmem_need, 32 << 20), vmem_cap - (2 << 20)))

        # TODO(synk): batch several same-slab ROIs per grid step to amortize the
        # ~0.35us/step overhead for K ~ 1000; on v5e also consider
        # pipeline_mode=pl.Buffered(3) on the feature spec if the slab DMA is
        # exposed when the (level, batch) key changes.
        out = pl.pallas_call(
            _roi_align_kernel,
            out_shape=jax.ShapeDtypeStruct((K, PP, C * PP), jnp.float32),
            grid_spec=pltpu.PrefetchScalarGridSpec(
                num_scalar_prefetch=2,
                grid=(C // tc, K),                 # ROI axis innermost -> slab DMA reuse
                in_specs=[
                    # per-ROI separable weights (lane-dense)
                    pl.BlockSpec((None, PP, Hmax), lambda c, r, lvl, b: (r, 0, 0)),
                    pl.BlockSpec((None, PP, Wmax), lambda c, r, lvl, b: (r, 0, 0)),
                    # the ROI's (level, batch, channel-tile) feature slab
                    pl.BlockSpec((None, None, tc * Hmax, Wmax),
                                 lambda c, r, lvl, b: (lvl[r], b[r], c, 0)),
                ],
                out_specs=pl.BlockSpec((None, PP, tc * PP),
                                       lambda c, r, lvl, b: (r, 0, c)),
            ),
            compiler_params=pltpu.CompilerParams(
                dimension_semantics=("parallel", "parallel"),
                vmem_limit_bytes=vmem_limit),
        )(lvls_s, bidx_s, At, Bt, stacked)

        # (K, py, (c, px)) -> (K, C, P, P), drop the padded rows/cols, un-sort.
        out = out.reshape(K, PP, C, PP)
        out = jnp.transpose(out, (0, 2, 1, 3))[:, :, :P, :P]
        return out[inv_order]


# ---------------------------------------------------------------------------
# Pure-numpy reference (independent loop implementation) for verification
# ---------------------------------------------------------------------------
def _reference_forward(feats, rois, strides, finest_scale, P=7, G=2):
    feats = [np.asarray(f, np.float32) for f in feats]
    rois = np.asarray(rois, np.float32)
    K, C = rois.shape[0], feats[0].shape[1]
    L = len(feats)
    scale = np.sqrt((rois[:, 3] - rois[:, 1] + 1) * (rois[:, 4] - rois[:, 2] + 1))
    lvl = np.clip(np.floor(np.log2(scale / finest_scale + 1e-6)), 0, L - 1).astype(np.int64)
    out = np.zeros((K, C, P, P), np.float32)
    for r in range(K):
        l = int(lvl[r]); b = int(rois[r, 0]); sp = 1.0 / strides[l]
        feat = feats[l][b]
        H, W = feat.shape[1], feat.shape[2]
        x1, y1, x2, y2 = (float(v) for v in rois[r, 1:5])
        rsw, rsh = x1 * sp, y1 * sp
        rew, reh = (x2 + 1.0) * sp, (y2 + 1.0) * sp
        rw, rh = max(rew - rsw, 0.0), max(reh - rsh, 0.0)
        bw, bh = rw / P, rh / P
        for py in range(P):
            for px in range(P):
                acc = np.zeros(C, np.float32)
                for gy in range(G):
                    for gx in range(G):
                        y = rsh + py * bh + (gy + 0.5) * bh / G
                        x = rsw + px * bw + (gx + 0.5) * bw / G
                        if y < -1.0 or y > H or x < -1.0 or x > W:
                            continue
                        yy = min(max(y, 0.0), H - 1.0)
                        xx = min(max(x, 0.0), W - 1.0)
                        y0, x0 = int(np.floor(yy)), int(np.floor(xx))
                        y1h, x1h = min(y0 + 1, H - 1), min(x0 + 1, W - 1)
                        ly, lx = yy - y0, xx - x0
                        acc += ((1 - ly) * (1 - lx) * feat[:, y0, x0]
                                + (1 - ly) * lx * feat[:, y0, x1h]
                                + ly * (1 - lx) * feat[:, y1h, x0]
                                + ly * lx * feat[:, y1h, x1h])
                out[r, :, py, px] = acc / (G * G)
    return out


# ---------------------------------------------------------------------------
if __name__ == "__main__":
    key = jax.random.PRNGKey(0)
    keys = jax.random.split(key, 8)

    N, C = 2, 4
    strides = (4, 8, 16, 32)
    img = 64
    # multi-level feature maps (NCHW): (2,4,16,16), (2,4,8,8), (2,4,4,4), (2,4,2,2)
    feats = [jax.random.normal(keys[i], (N, C, img // s, img // s), jnp.float32)
             for i, s in enumerate(strides)]

    K = 8
    sizes = jnp.array([6., 10., 14., 20., 28., 40., 50., 60.], jnp.float32)
    cx = jax.random.uniform(keys[4], (K,), minval=16., maxval=48.)
    cy = jax.random.uniform(keys[5], (K,), minval=16., maxval=48.)
    batch = jnp.array([0, 1, 0, 1, 0, 1, 0, 1], jnp.float32)
    x1 = jnp.clip(cx - sizes / 2, 0., img - 1.)
    y1 = jnp.clip(cy - sizes / 2, 0., img - 1.)
    x2 = jnp.clip(cx + sizes / 2, 0., img - 1.)
    y2 = jnp.clip(cy + sizes / 2, 0., img - 1.)
    rois = jnp.stack([batch, x1, y1, x2, y2], axis=-1)

    extractor = SingleRoIExtractorPallas(
        roi_layer=dict(type="RoIAlign", out_size=7, sample_num=2),
        out_channels=C, featmap_strides=strides, finest_scale=6)

    out = extractor(feats, rois)
    out = jax.block_until_ready(out)

    assert out.shape == (K, C, 7, 7) and out.dtype == jnp.float32
    ref = _reference_forward(feats, rois, strides, finest_scale=6, P=7, G=2)
    # bf16 MXU operands (f32 accumulation) -> bf16-level tolerance.
    assert np.allclose(np.asarray(out), ref, atol=3e-2, rtol=2e-2), \
        "kernel output mismatch vs reference"

    print("KERNEL_OK")
</pallas_src>

<mosaic_0001>
module attributes {stable_mosaic.version = 11 : i64} {
  func.func @_roi_align_kernel(%arg0: i32, %arg1: i32, %arg2: memref<8xi32, #tpu.memory_space<smem>>, %arg3: memref<8xi32, #tpu.memory_space<smem>>, %arg4: memref<1x8x16xbf16, #tpu.memory_space<vmem>>, %arg5: memref<1x8x16xbf16, #tpu.memory_space<vmem>>, %arg6: memref<1x1x64x16xbf16, #tpu.memory_space<vmem>>, %arg7: memref<1x8x32xf32, #tpu.memory_space<vmem>>) attributes {dimension_semantics = [#tpu.dimension_semantics<parallel>, #tpu.dimension_semantics<parallel>], iteration_bounds = array<i64: 1, 8>, scalar_prefetch = 2 : i64, scratch_operands = 0 : i64, tpu.core_type = #tpu.core_type<tc>, window_params = [{transform_indices = @transform_0, window_bounds = array<i64: 1, 8, 16>}, {transform_indices = @transform_1, window_bounds = array<i64: 1, 8, 16>}, {transform_indices = @transform_2, window_bounds = array<i64: 1, 1, 64, 16>}, {transform_indices = @transform_3, window_bounds = array<i64: 1, 8, 32>}]} {
    %c0 = arith.constant 0 : index
    %c0_0 = arith.constant 0 : index
    %c0_1 = arith.constant 0 : index
    %0 = vector.load %arg4[%c0, %c0_0, %c0_1] : memref<1x8x16xbf16, #tpu.memory_space<vmem>>, vector<1x8x16xbf16>
    %1 = vector.shape_cast %0 : vector<1x8x16xbf16> to vector<8x16xbf16>
    %c0_2 = arith.constant 0 : index
    %c0_3 = arith.constant 0 : index
    %c0_4 = arith.constant 0 : index
    %2 = vector.load %arg5[%c0_2, %c0_3, %c0_4] : memref<1x8x16xbf16, #tpu.memory_space<vmem>>, vector<1x8x16xbf16>
    %3 = vector.shape_cast %2 : vector<1x8x16xbf16> to vector<8x16xbf16>
    %c0_5 = arith.constant 0 : index
    %c0_6 = arith.constant 0 : index
    %c0_7 = arith.constant 0 : index
    %c0_8 = arith.constant 0 : index
    %4 = vector.load %arg6[%c0_5, %c0_6, %c0_7, %c0_8] : memref<1x1x64x16xbf16, #tpu.memory_space<vmem>>, vector<1x1x64x16xbf16>
    %5 = vector.shape_cast %4 : vector<1x1x64x16xbf16> to vector<64x16xbf16>
    %cst = arith.constant dense<0.000000e+00> : vector<64x8xf32>
    %6 = tpu.matmul %5, %3, %cst {dimension_numbers = #tpu.dot_dimension_numbers<[1], [1], [0], [0], [0, 0, 1, 0], [], []>} : vector<64x16xbf16>, vector<8x16xbf16>, vector<64x8xf32> -> vector<64x8xf32>
    %7 = vector.shape_cast %6 : vector<64x8xf32> to vector<4x16x8xf32>
    %8 = tpu.transpose %7, [0, 2, 1] : vector<4x16x8xf32> -> vector<4x8x16xf32>
    %9 = vector.shape_cast %8 : vector<4x8x16xf32> to vector<32x16xf32>
    %10 = arith.truncf %9 : vector<32x16xf32> to vector<32x16xbf16>
    %cst_9 = arith.constant dense<0.000000e+00> : vector<32x8xf32>
    %11 = tpu.matmul %10, %1, %cst_9 {dimension_numbers = #tpu.dot_dimension_numbers<[1], [1], [0], [0], [0, 0, 1, 0], [], []>} : vector<32x16xbf16>, vector<8x16xbf16>, vector<32x8xf32> -> vector<32x8xf32>
    %12 = tpu.transpose %11, [1, 0] : vector<32x8xf32> -> vector<8x32xf32>
    %c0_10 = arith.constant 0 : index
    %c0_11 = arith.constant 0 : index
    %c0_12 = arith.constant 0 : index
    %13 = vector.load %arg7[%c0_10, %c0_11, %c0_12] : memref<1x8x32xf32, #tpu.memory_space<vmem>>, vector<1x8x32xf32>
    %14 = vector.shape_cast %13 : vector<1x8x32xf32> to vector<8x32xf32>
    %15 = vector.shape_cast %12 : vector<8x32xf32> to vector<1x8x32xf32>
    tpu.vector_store %arg7[%c0_10, %c0_11, %c0_12], %15 {strides = array<i32>} : memref<1x8x32xf32, #tpu.memory_space<vmem>>, vector<1x8x32xf32>,
    return
  }
  func.func @transform_0(%arg0: i32, %arg1: i32, %arg2: memref<8xi32, #tpu.memory_space<smem>>, %arg3: memref<8xi32, #tpu.memory_space<smem>>) -> (i32, i32, i32) {
    %c0_i32 = arith.constant 0 : i32
    %c0_i32_0 = arith.constant 0 : i32
    %c0_i32_1 = arith.constant 0 : i32
    return %arg1, %c0_i32, %c0_i32_0 : i32, i32, i32
  }
  func.func @transform_1(%arg0: i32, %arg1: i32, %arg2: memref<8xi32, #tpu.memory_space<smem>>, %arg3: memref<8xi32, #tpu.memory_space<smem>>) -> (i32, i32, i32) {
    %c0_i32 = arith.constant 0 : i32
    %c0_i32_0 = arith.constant 0 : i32
    %c0_i32_1 = arith.constant 0 : i32
    return %arg1, %c0_i32, %c0_i32_0 : i32, i32, i32
  }
  func.func @transform_2(%arg0: i32, %arg1: i32, %arg2: memref<8xi32, #tpu.memory_space<smem>>, %arg3: memref<8xi32, #tpu.memory_space<smem>>) -> (i32, i32, i32, i32) {
    %0 = arith.index_cast %arg1 : i32 to index
    %1 = memref.load %arg2[%0] : memref<8xi32, #tpu.memory_space<smem>>
    %2 = arith.index_cast %arg1 : i32 to index
    %3 = memref.load %arg3[%2] : memref<8xi32, #tpu.memory_space<smem>>
    %c0_i32 = arith.constant 0 : i32
    %c0_i32_0 = arith.constant 0 : i32
    return %1, %3, %arg0, %c0_i32 : i32, i32, i32, i32
  }
  func.func @transform_3(%arg0: i32, %arg1: i32, %arg2: memref<8xi32, #tpu.memory_space<smem>>, %arg3: memref<8xi32, #tpu.memory_space<smem>>) -> (i32, i32, i32) {
    %c0_i32 = arith.constant 0 : i32
    %c0_i32_0 = arith.constant 0 : i32
    return %arg1, %c0_i32, %arg0 : i32, i32, i32
  }
}

</mosaic_0001>

<llo_original>
// kernel: tpu_custom_call.1
$region0: #{tpu_custom_call.1}
  #allocation0 [shape = 'u32[]', space=smem, size = 0x4, offset = 0x4, fixed_abs, tag = 'smem constant byte address 0x4 - core index']
  #allocation1 [shape = 'u32[72,128]{1,0:T(1,128)}', space=vmem, size = 0x9000, scoped, tag = 'internal scratch']
  #allocation2 [shape = 's32[1]{0}', space=sflag, size = 0x4, scoped, tag = 'scoped memory for tpu_custom_call.1']
  #allocation3 [shape = 'u8[512]{0}', space=smem, size = 0x200, scoped, tag = 'prefetched SMEM operand 0']
  #allocation4 [shape = 'u8[512]{0}', space=smem, size = 0x200, scoped, tag = 'prefetched SMEM operand 1']
  %s0 = inlined_call_operand.vmem [shape: s32[8], index: 0, kind: input, shape index: {}]
  %s1 = inlined_call_operand.vmem [shape: s32[8], index: 1, kind: input, shape index: {}]
  %s2 = inlined_call_operand.vmem [shape: bf16[8,8,16], index: 2, kind: input, shape index: {}]
  %s3 = inlined_call_operand.vmem [shape: bf16[8,8,16], index: 3, kind: input, shape index: {}]
  %s4 = inlined_call_operand.vmem [shape: bf16[4,2,64,16], index: 4, kind: input, shape index: {}]
  %s5 = inlined_call_operand.hbm [shape: f32[8,8,32], index: 5, kind: output, shape index: {}]
  %s6 = sld [smem:[#allocation0]]
  $region45: #{tpu_custom_call.1} parent=0
    _
  %s8 = ssub.s32 1, %s6
  %s9 = scalar_select 0, %s8, %s6
  %s11 = sshll.u32 %s0, 4
  %s12 = int_to_ptr.vmem [resolvable:$true] %s11
  %14 = dma.vmem_to_smem %s12, 16, [#allocation3], [#allocation2]
  %s16 = sshll.u32 %s1, 4
  %s17 = int_to_ptr.vmem [resolvable:$true] %s16
  %19 = dma.vmem_to_smem %s17, 16, [#allocation4], [#allocation2]
  %21 = dma.done [#allocation2], 32
  %22 = sfence
  $region1: #{tpu_custom_call.1} parent=0
    #allocation5 [shape = 'u8[8192]{0}', space=vmem, size = 0x2000, scoped, tag = 'output window, operand 0']
    #allocation6 [shape = 's32[2]{0}', space=sflag, size = 0x8, scoped, tag = 'scoped memory for tpu_custom_call.1']
    %23 = vsyncpa [#allocation6], 0
    %s24 = scalar_lea.sflag [#allocation6], 1
    %25 = vsyncpa %s24, 0
    loop: start=0, step=1, limit=10
    $region2: #{tpu_custom_call.1} parent=1 // loop_pre_header
      _
    $region3: #{tpu_custom_call.1} parent=1 // loop_header
      %s27 = sphi 0, %s31
      %p28 = scmp.ge.s32.totalorder %s27, 10
      %s34 = sphi 0, %s46
      %s35 = sphi 0, %s42
      %s36 = sphi 0, %s34
      %s37 = sphi 0, %s35
      %s38 = sphi 0, %s36
      %s39 = sphi 0, %s37
      %s49 = sphi 0, %s51
      %s52 = sphi 0, %s49
      %s53 = sphi 0, %s52
      %s69 = sphi 0, %s53
      %s75 = sphi 0, %s77
      %s78 = sphi 0, %s75
      %s79 = sphi 0, %s78
      %s95 = sphi 0, %s79
      %s109 = sphi 0, %s111
      %s112 = sphi 0, %s109
      %s113 = sphi 0, %s112
      %s129 = sphi 0, %s113
      %s137 = sphi 0, %s139
      %s140 = sphi 0, %s137
      %s141 = sphi 0, %s140
      %s157 = sphi 0, %s141
    $region4: #{tpu_custom_call.1} parent=1 // loop_header_branch
      %30 = sbr.rel (%p28) target = $region8
    $region5: #{tpu_custom_call.1} parent=1 // loop_body
      %s32 = ssub.s32 %s27, 1
      %s33 = ssub.s32 %s27, 2
      %s40 = sadd.s32 1, %s35
      %p41 = scmp.ge.s32.totalorder %s40, 8
      %s42 = scalar_select %p41, 0, %s40
      %s43 = sadd.s32 1, %s34
      %s44 = scalar_select %p41, %s43, %s34
      %p45 = scmp.ge.s32.totalorder %s44, 1
      %s46 = scalar_select %p45, 0, %s44
      %s47 = ssub.s32 %s35, %s42
      %p48 = scmp.eq.s32.totalorder %s47, 0
      %s50 = sadd.s32 %s49, 1
      %s51 = scalar_select %p48, %s49, %s50
      %p54 = pneg %p48
      %p55 = scmp.eq.s32.totalorder %s27, 7
      %p56 = por %p54, %p55
      %p57 = scmp.ne.s32.totalorder %s49, %s52
      %p58 = scmp.eq.s32.totalorder %s27, 0
      %p59 = por %p57, %p58
      %p60 = scmp.ne.s32.totalorder %s49, %s52
      %p61 = scmp.eq.s32.totalorder %s32, 7
      %p62 = por %p60, %p61
      %p63 = scmp.ne.s32.totalorder %s52, %s53
      %p64 = scmp.eq.s32.totalorder %s32, 0
      %p65 = por %p63, %p64
      %p66 = scmp.ne.s32.totalorder %s52, %s53
      %p67 = scmp.eq.s32.totalorder %s33, 7
      %p68 = por %p66, %p67
      %p70 = scmp.ne.s32.totalorder %s53, %s69
      %p71 = scmp.eq.s32.totalorder %s33, 0
      %p72 = por %p70, %p71
      %s73 = ssub.s32 %s35, %s42
      %p74 = scmp.eq.s32.totalorder %s73, 0
      %s76 = sadd.s32 %s75, 1
      %s77 = scalar_select %p74, %s75, %s76
      %p80 = pneg %p74
      %p81 = scmp.eq.s32.totalorder %s27, 7
      %p82 = por %p80, %p81
      %p83 = scmp.ne.s32.totalorder %s75, %s78
      %p84 = scmp.eq.s32.totalorder %s27, 0
      %p85 = por %p83, %p84
      %p86 = scmp.ne.s32.totalorder %s75, %s78
      %p87 = scmp.eq.s32.totalorder %s32, 7
      %p88 = por %p86, %p87
      %p89 = scmp.ne.s32.totalorder %s78, %s79
      %p90 = scmp.eq.s32.totalorder %s32, 0
      %p91 = por %p89, %p90
      %p92 = scmp.ne.s32.totalorder %s78, %s79
      %p93 = scmp.eq.s32.totalorder %s33, 7
      %p94 = por %p92, %p93
      %p96 = scmp.ne.s32.totalorder %s79, %s95
      %p97 = scmp.eq.s32.totalorder %s33, 0
      %p98 = por %p96, %p97
      %s99 = sld [smem:[#allocation3 + %s35]]
      %s100 = sld [smem:[#allocation4 + %s35]]
      %s101 = sld [smem:[#allocation3 + %s42]]
      %s102 = sld [smem:[#allocation4 + %s42]]
      %s103 = ssub.s32 %s99, %s101
      %s104 = ssub.s32 %s100, %s102
      %s105 = sor.u32 %s103, %s104
      %s106 = ssub.s32 %s34, %s46
      %s107 = sor.u32 %s105, %s106
      %p108 = scmp.eq.s32.totalorder %s107, 0
      %s110 = sadd.s32 %s109, 1
      %s111 = scalar_select %p108, %s109, %s110
      %p114 = pneg %p108
      %p115 = scmp.eq.s32.totalorder %s27, 7
      %p116 = por %p114, %p115
      %p117 = scmp.ne.s32.totalorder %s109, %s112
      %p118 = scmp.eq.s32.totalorder %s27, 0
      %p119 = por %p117, %p118
      %p120 = scmp.ne.s32.totalorder %s109, %s112
      %p121 = scmp.eq.s32.totalorder %s32, 7
      %p122 = por %p120, %p121
      %p123 = scmp.ne.s32.totalorder %s112, %s113
      %p124 = scmp.eq.s32.totalorder %s32, 0
      %p125 = por %p123, %p124
      %p126 = scmp.ne.s32.totalorder %s112, %s113
      %p127 = scmp.eq.s32.totalorder %s33, 7
      %p128 = por %p126, %p127
      %p130 = scmp.ne.s32.totalorder %s113, %s129
      %p131 = scmp.eq.s32.totalorder %s33, 0
      %p132 = por %p130, %p131
      %s133 = ssub.s32 %s35, %s42
      %s134 = ssub.s32 %s34, %s46
      %s135 = sor.u32 %s133, %s134
      %p136 = scmp.eq.s32.totalorder %s135, 0
      %s138 = sadd.s32 %s137, 1
      %s139 = scalar_select %p136, %s137, %s138
      %p142 = pneg %p136
      %p143 = scmp.eq.s32.totalorder %s27, 7
      %p144 = por %p142, %p143
      %p145 = scmp.ne.s32.totalorder %s137, %s140
      %p146 = scmp.eq.s32.totalorder %s27, 0
      %p147 = por %p145, %p146
      %p148 = scmp.ne.s32.totalorder %s137, %s140
      %p149 = scmp.eq.s32.totalorder %s32, 7
      %p150 = por %p148, %p149
      %p151 = scmp.ne.s32.totalorder %s140, %s141
      %p152 = scmp.eq.s32.totalorder %s32, 0
      %p153 = por %p151, %p152
      %p154 = scmp.ne.s32.totalorder %s140, %s141
      %p155 = scmp.eq.s32.totalorder %s33, 7
      %p156 = por %p154, %p155
      %p158 = scmp.ne.s32.totalorder %s141, %s157
      %p159 = scmp.eq.s32.totalorder %s33, 0
      %p160 = por %p158, %p159
      %p161 = scmp.le.s32.totalorder 1, %s27
      %p162 = scmp.lt.s32.totalorder %s27, 9
      %p163 = pnand %p161, %p162
      %p164 = pneg %p163
      // Predicated region
      $region9: #{tpu_custom_call.1} parent=5 // pred_check
        _
      $region10: #{tpu_custom_call.1} parent=5 // pred_check_branch
        %166 = sbr.rel (%p163) target = $region12
      $region11: #{tpu_custom_call.1} parent=5 // pred_region
        %s167 = ssub.s32 %s27, 1
      $region12: #{tpu_custom_call.1} parent=5 // pred_fallthru
        _
      %p168 = scmp.lt.s32.totalorder %s27, 8
      // Predicated region
      $region13: #{tpu_custom_call.1} parent=5 // pred_check
        %p169 = pneg %p168
      $region14: #{tpu_custom_call.1} parent=5 // pred_check_branch
        %171 = sbr.rel (%p169) target = $region16
      $region15: #{tpu_custom_call.1} parent=5 // pred_region
        // Predicated region
        $region17: #{tpu_custom_call.1} parent=15 // pred_check
          %p172 = pneg %p59
        $region18: #{tpu_custom_call.1} parent=15 // pred_check_branch
          %174 = sbr.rel (%p172) target = $region20
        $region19: #{tpu_custom_call.1} parent=15 // pred_region
          %p175 = scmp.lt.s32.totalorder %s35, 7
          %s176 = scalar_select %p175, %s35, 7
          %s177 = smul.addr %s176, 4
          %s178 = scalar_lea.vmem %s2, %s177
        $region20: #{tpu_custom_call.1} parent=15 // pred_fallthru
          _
        // Predicated region
        $region21: #{tpu_custom_call.1} parent=15 // pred_check
          %p179 = pneg %p85
        $region22: #{tpu_custom_call.1} parent=15 // pred_check_branch
          %181 = sbr.rel (%p179) target = $region24
        $region23: #{tpu_custom_call.1} parent=15 // pred_region
          %p182 = scmp.lt.s32.totalorder %s35, 7
          %s183 = scalar_select %p182, %s35, 7
          %s184 = smul.addr %s183, 4
          %s185 = scalar_lea.vmem %s3, %s184
        $region24: #{tpu_custom_call.1} parent=15 // pred_fallthru
          _
        // Predicated region
        $region25: #{tpu_custom_call.1} parent=15 // pred_check
          %p186 = pneg %p119
        $region26: #{tpu_custom_call.1} parent=15 // pred_check_branch
          %188 = sbr.rel (%p186) target = $region28
        $region27: #{tpu_custom_call.1} parent=15 // pred_region
          %s189 = sld [smem:[#allocation3 + %s35]]
          %s190 = sld [smem:[#allocation4 + %s35]]
          %s191 = smul.u32 8, %s34
          %p192 = scmp.lt.s32.totalorder %s189, 3
          %s193 = scalar_select %p192, %s189, 3
          %p194 = scmp.lt.s32.totalorder %s190, 1
          %s195 = scalar_select %p194, %s190, 1
          %p196 = scmp.lt.s32.totalorder %s191, 7
          %s197 = scalar_select %p196, %s191, 7
          %s198 = smul.addr %s195, 8
          %s199 = sadd.s32 %s197, %s198
          %s200 = smul.addr %s193, 16
          %s201 = sadd.s32 %s199, %s200
          %s202 = smul.addr %s201, 4
          %s203 = scalar_lea.vmem %s4, %s202
          %s204 = sld [smem:[#allocation3 + %s35]]
          %s205 = sld [smem:[#allocation4 + %s35]]
          %s206 = smul.u32 8, %s34
        $region28: #{tpu_custom_call.1} parent=15 // pred_fallthru
          _
      $region16: #{tpu_custom_call.1} parent=5 // pred_fallthru
        _
      %p207 = scmp.le.s32.totalorder 1, %s27
      %p208 = scmp.lt.s32.totalorder %s27, 9
      %p209 = pnand %p207, %p208
      %p210 = pneg %p209
      // Predicated region
      $region29: #{tpu_custom_call.1} parent=5 // pred_check
        _
      $region30: #{tpu_custom_call.1} parent=5 // pred_check_branch
        %212 = sbr.rel (%p209) target = $region32
      $region31: #{tpu_custom_call.1} parent=5 // pred_region
        %s213 = ssub.s32 %s27, 1
        %p214 = scmp.lt.s32.totalorder %s37, 7
        %s215 = scalar_select %p214, %s37, 7
        %s216 = smul.addr %s215, 4
        %s217 = scalar_lea.vmem %s2, %s216
        %p218 = pneg %p65
        %p219 = pneg %p62
        %p220 = scmp.lt.s32.totalorder %s37, 7
        %s221 = scalar_select %p220, %s37, 7
        %s222 = smul.addr %s221, 4
        %s223 = scalar_lea.vmem %s3, %s222
        %p224 = pneg %p91
        %p225 = pneg %p88
        %s226 = sld [smem:[#allocation3 + %s37]]
        %s227 = sld [smem:[#allocation4 + %s37]]
        %s228 = smul.u32 8, %s36
        %p229 = scmp.lt.s32.totalorder %s226, 3
        %s230 = scalar_select %p229, %s226, 3
        %p231 = scmp.lt.s32.totalorder %s227, 1
        %s232 = scalar_select %p231, %s227, 1
        %p233 = scmp.lt.s32.totalorder %s228, 7
        %s234 = scalar_select %p233, %s228, 7
        %s235 = smul.addr %s232, 8
        %s236 = sadd.s32 %s234, %s235
        %s237 = smul.addr %s230, 16
        %s238 = sadd.s32 %s236, %s237
        %s239 = smul.addr %s238, 4
        %s240 = scalar_lea.vmem %s4, %s239
        %p241 = pneg %p125
        %p242 = pneg %p122
        %p243 = pneg %p153
        %p244 = pneg %p150
        %s245 = sand.u32 %s140, 1
        %s246 = scalar_lea.sflag [#allocation6], %s245
        %s247 = sand.u32 %s140, 1
        %s248 = smul.addr %s247, 8
        %s249 = scalar_lea.vmem [#allocation5], %s248
        %p250 = scmp.lt.s32.totalorder %s37, 7
        %s251 = scalar_select %p250, %s37, 7
        %s252 = smul.addr %s251, 4
        %s253 = scalar_lea.vmem %s2, %s252
        %p254 = scmp.lt.s32.totalorder %s37, 7
        %s255 = scalar_select %p254, %s37, 7
        %s256 = smul.addr %s255, 4
        %s257 = scalar_lea.vmem %s3, %s256
        %s258 = sld [smem:[#allocation3 + %s37]]
        %s259 = sld [smem:[#allocation4 + %s37]]
        %s260 = smul.u32 8, %s36
        %p261 = scmp.lt.s32.totalorder %s258, 3
        %s262 = scalar_select %p261, %s258, 3
        %p263 = scmp.lt.s32.totalorder %s259, 1
        %s264 = scalar_select %p263, %s259, 1
        %p265 = scmp.lt.s32.totalorder %s260, 7
        %s266 = scalar_select %p265, %s260, 7
        %s267 = smul.addr %s264, 8
        %s268 = sadd.s32 %s266, %s267
        %s269 = smul.addr %s262, 16
        %s270 = sadd.s32 %s268, %s269
        %s271 = smul.addr %s270, 4
        %s272 = scalar_lea.vmem %s4, %s271
        %s273 = sld [smem:[#allocation3 + %s37]]
        %s274 = sld [smem:[#allocation4 + %s37]]
        %s275 = smul.u32 8, %s36
        %v277 = vld [vmem:[%s253] sm:$0xf]
        %v278 = vld [vmem:[%s257] sm:$0xf]
        %v279 = vld [vmem:[%s272] sm:$0xf]
        %v280 = vld [vmem:[%s272 + $0x4] sm:$0xf]
        %v281 = vld [vmem:[%s272 + $0x8] sm:$0xf]
        %v282 = vld [vmem:[%s272 + $0xc] sm:$0xf]
        %v283 = vld [vmem:[%s272 + $0x10] sm:$0xf]
        %v284 = vld [vmem:[%s272 + $0x14] sm:$0xf]
        %v285 = vld [vmem:[%s272 + $0x18] sm:$0xf]
        %v286 = vld [vmem:[%s272 + $0x1c] sm:$0xf]
        %v295 = vunpack.c.l.b16 %v279
        %v296 = vunpack.c.l.b16 %v280
        %v297 = vunpack.c.l.b16 %v281
        %v298 = vunpack.c.l.b16 %v282
        %v299 = vunpack.c.l.b16 %v283
        %v300 = vunpack.c.l.b16 %v284
        %v301 = vunpack.c.l.b16 %v285
        %v302 = vunpack.c.l.b16 %v286
        %v303 = vpack.c.b16 %v296, %v295
        %v304 = vpack.c.b16 %v298, %v297
        %v305 = vpack.c.b16 %v300, %v299
        %v306 = vpack.c.b16 %v302, %v301
        %vm307 = vcmask 130048
        %v309 = vsel %vm307, %v303, 0
        %v312 = vsel %vm307, %v304, 0
        %v315 = vsel %vm307, %v305, 0
        %v318 = vsel %vm307, %v306, 0
        %v321 = vsel %vm307, %v278, 0
        %323 = vmatpush.bf16.xpose.msra.mxu0 0
        %324 = vmatpush.bf16.xpose.msra.mxu0 0
        %325 = vmatpush.bf16.xpose.msra.mxu0 0
        %326 = vmatpush.bf16.xpose.msra.mxu0 0
        %327 = vmatpush.bf16.xpose.msra.mxu0 0
        %328 = vmatpush.bf16.xpose.msra.mxu0 0
        %329 = vmatpush.bf16.xpose.msra.mxu0 0
        %330 = vmatpush.bf16.xpose.msra.mxu0 %v321
        %331 = vmatmul.bf16.gmra.mxu0 %v309
        %v332 = vpop.f32.mrf.mxu0
        %v333 = vadd.f32 0.0, %v332
        %v334 = vpop.f32.mrf.mxu0
        %v335 = vadd.f32 0.0, %v334
        %336 = vmatmul.bf16.gmra.mxu0 %v312
        %v337 = vpop.f32.mrf.mxu0
        %v338 = vadd.f32 0.0, %v337
        %v339 = vpop.f32.mrf.mxu0
        %v340 = vadd.f32 0.0, %v339
        %341 = vmatmul.bf16.gmra.mxu0 %v315
        %v342 = vpop.f32.mrf.mxu0
        %v343 = vadd.f32 0.0, %v342
        %v344 = vpop.f32.mrf.mxu0
        %v345 = vadd.f32 0.0, %v344
        %346 = vmatmul.bf16.gmra.mxu0 %v318
        %v347 = vpop.f32.mrf.mxu0
        %v348 = vadd.f32 0.0, %v347
        %v349 = vpop.f32.mrf.mxu0
        %v350 = vadd.f32 0.0, %v349
        %351 = vdwg.mxu0
        %352 = vxpose.xlu0.b32.start [1/16] %v333, 128
        %353 = vxpose.xlu0.b32.cont [2/16] %v335, 128
        %354 = vxpose.xlu0.b32.cont [3/16] 0.0, 128
        %355 = vxpose.xlu0.b32.cont [4/16] 0.0, 128
        %356 = vxpose.xlu0.b32.cont [5/16] 0.0, 128
        %357 = vxpose.xlu0.b32.cont [6/16] 0.0, 128
        %358 = vxpose.xlu0.b32.cont [7/16] 0.0, 128
        %359 = vxpose.xlu0.b32.cont [8/16] 0.0, 128
        %360 = vxpose.xlu0.b32.cont [9/16] 0.0, 128
        %361 = vxpose.xlu0.b32.cont [10/16] 0.0, 128
        %362 = vxpose.xlu0.b32.cont [11/16] 0.0, 128
        %363 = vxpose.xlu0.b32.cont [12/16] 0.0, 128
        %364 = vxpose.xlu0.b32.cont [13/16] 0.0, 128
        %365 = vxpose.xlu0.b32.cont [14/16] 0.0, 128
        %366 = vxpose.xlu0.b32.cont [15/16] 0.0, 128
        %367 = vxpose.xlu0.b32.end [16/16] 0.0, 128
        %v368 = vpop.trf.xlu0
        %v369 = vpop.trf.xlu0
        %v370 = vpop.trf.xlu0
        %v371 = vpop.trf.xlu0
        %v372 = vpop.trf.xlu0
        %v373 = vpop.trf.xlu0
        %v374 = vpop.trf.xlu0
        %v375 = vpop.trf.xlu0
        %v376 = vpop.trf.xlu0
        %v377 = vpop.trf.xlu0
        %v378 = vpop.trf.xlu0
        %v379 = vpop.trf.xlu0
        %v380 = vpop.trf.xlu0
        %v381 = vpop.trf.xlu0
        %v382 = vpop.trf.xlu0
        %v383 = vpop.trf.xlu0
        %384 = vxpose.xlu0.b32.start [1/16] %v338, 128
        %385 = vxpose.xlu0.b32.cont [2/16] %v340, 128
        %386 = vxpose.xlu0.b32.cont [3/16] 0.0, 128
        %387 = vxpose.xlu0.b32.cont [4/16] 0.0, 128
        %388 = vxpose.xlu0.b32.cont [5/16] 0.0, 128
        %389 = vxpose.xlu0.b32.cont [6/16] 0.0, 128
        %390 = vxpose.xlu0.b32.cont [7/16] 0.0, 128
        %391 = vxpose.xlu0.b32.cont [8/16] 0.0, 128
        %392 = vxpose.xlu0.b32.cont [9/16] 0.0, 128
        %393 = vxpose.xlu0.b32.cont [10/16] 0.0, 128
        %394 = vxpose.xlu0.b32.cont [11/16] 0.0, 128
        %395 = vxpose.xlu0.b32.cont [12/16] 0.0, 128
        %396 = vxpose.xlu0.b32.cont [13/16] 0.0, 128
        %397 = vxpose.xlu0.b32.cont [14/16] 0.0, 128
        %398 = vxpose.xlu0.b32.cont [15/16] 0.0, 128
        %399 = vxpose.xlu0.b32.end [16/16] 0.0, 128
        %v400 = vpop.trf.xlu0
        %v401 = vpop.trf.xlu0
        %v402 = vpop.trf.xlu0
        %v403 = vpop.trf.xlu0
        %v404 = vpop.trf.xlu0
        %v405 = vpop.trf.xlu0
        %v406 = vpop.trf.xlu0
        %v407 = vpop.trf.xlu0
        %v408 = vpop.trf.xlu0
        %v409 = vpop.trf.xlu0
        %v410 = vpop.trf.xlu0
        %v411 = vpop.trf.xlu0
        %v412 = vpop.trf.xlu0
        %v413 = vpop.trf.xlu0
        %v414 = vpop.trf.xlu0
        %v415 = vpop.trf.xlu0
        %416 = vxpose.xlu0.b32.start [1/16] %v343, 128
        %417 = vxpose.xlu0.b32.cont [2/16] %v345, 128
        %418 = vxpose.xlu0.b32.cont [3/16] 0.0, 128
        %419 = vxpose.xlu0.b32.cont [4/16] 0.0, 128
        %420 = vxpose.xlu0.b32.cont [5/16] 0.0, 128
        %421 = vxpose.xlu0.b32.cont [6/16] 0.0, 128
        %422 = vxpose.xlu0.b32.cont [7/16] 0.0, 128
        %423 = vxpose.xlu0.b32.cont [8/16] 0.0, 128
        %424 = vxpose.xlu0.b32.cont [9/16] 0.0, 128
        %425 = vxpose.xlu0.b32.cont [10/16] 0.0, 128
        %426 = vxpose.xlu0.b32.cont [11/16] 0.0, 128
        %427 = vxpose.xlu0.b32.cont [12/16] 0.0, 128
        %428 = vxpose.xlu0.b32.cont [13/16] 0.0, 128
        %429 = vxpose.xlu0.b32.cont [14/16] 0.0, 128
        %430 = vxpose.xlu0.b32.cont [15/16] 0.0, 128
        %431 = vxpose.xlu0.b32.end [16/16] 0.0, 128
        %v432 = vpop.trf.xlu0
        %v433 = vpop.trf.xlu0
        %v434 = vpop.trf.xlu0
        %v435 = vpop.trf.xlu0
        %v436 = vpop.trf.xlu0
        %v437 = vpop.trf.xlu0
        %v438 = vpop.trf.xlu0
        %v439 = vpop.trf.xlu0
        %v440 = vpop.trf.xlu0
        %v441 = vpop.trf.xlu0
        %v442 = vpop.trf.xlu0
        %v443 = vpop.trf.xlu0
        %v444 = vpop.trf.xlu0
        %v445 = vpop.trf.xlu0
        %v446 = vpop.trf.xlu0
        %v447 = vpop.trf.xlu0
        %448 = vxpose.xlu0.b32.start [1/16] %v348, 128
        %449 = vxpose.xlu0.b32.cont [2/16] %v350, 128
        %450 = vxpose.xlu0.b32.cont [3/16] 0.0, 128
        %451 = vxpose.xlu0.b32.cont [4/16] 0.0, 128
        %452 = vxpose.xlu0.b32.cont [5/16] 0.0, 128
        %453 = vxpose.xlu0.b32.cont [6/16] 0.0, 128
        %454 = vxpose.xlu0.b32.cont [7/16] 0.0, 128
        %455 = vxpose.xlu0.b32.cont [8/16] 0.0, 128
        %456 = vxpose.xlu0.b32.cont [9/16] 0.0, 128
        %457 = vxpose.xlu0.b32.cont [10/16] 0.0, 128
        %458 = vxpose.xlu0.b32.cont [11/16] 0.0, 128
        %459 = vxpose.xlu0.b32.cont [12/16] 0.0, 128
        %460 = vxpose.xlu0.b32.cont [13/16] 0.0, 128
        %461 = vxpose.xlu0.b32.cont [14/16] 0.0, 128
        %462 = vxpose.xlu0.b32.cont [15/16] 0.0, 128
        %463 = vxpose.xlu0.b32.end [16/16] 0.0, 128
        %v464 = vpop.trf.xlu0
        %v465 = vpop.trf.xlu0
        %v466 = vpop.trf.xlu0
        %v467 = vpop.trf.xlu0
        %v468 = vpop.trf.xlu0
        %v469 = vpop.trf.xlu0
        %v470 = vpop.trf.xlu0
        %v471 = vpop.trf.xlu0
        %v472 = vpop.trf.xlu0
        %v473 = vpop.trf.xlu0
        %v474 = vpop.trf.xlu0
        %v475 = vpop.trf.xlu0
        %v476 = vpop.trf.xlu0
        %v477 = vpop.trf.xlu0
        %v478 = vpop.trf.xlu0
        %v479 = vpop.trf.xlu0
        %v480 = vpack.c.bf16 %v400, %v368
        %v481 = vpack.c.bf16 %v464, %v432
        %v483 = vsel %vm307, %v480, 0
        %v486 = vsel %vm307, %v481, 0
        %v489 = vsel %vm307, %v277, 0
        %491 = vmatpush.bf16.xpose.msra.mxu0 0
        %492 = vmatpush.bf16.xpose.msra.mxu0 0
        %493 = vmatpush.bf16.xpose.msra.mxu0 0
        %494 = vmatpush.bf16.xpose.msra.mxu0 0
        %495 = vmatpush.bf16.xpose.msra.mxu0 0
        %496 = vmatpush.bf16.xpose.msra.mxu0 0
        %497 = vmatpush.bf16.xpose.msra.mxu0 0
        %498 = vmatpush.bf16.xpose.msra.mxu0 %v489
        %499 = vmatmul.bf16.gmra.mxu0 %v483
        %v500 = vpop.f32.mrf.mxu0
        %v501 = vadd.f32 0.0, %v500
        %v502 = vpop.f32.mrf.mxu0
        %v503 = vadd.f32 0.0, %v502
        %504 = vmatmul.bf16.gmra.mxu0 %v486
        %v505 = vpop.f32.mrf.mxu0
        %v506 = vadd.f32 0.0, %v505
        %v507 = vpop.f32.mrf.mxu0
        %v508 = vadd.f32 0.0, %v507
        %509 = vdwg.mxu0
        %510 = vxpose.xlu0.b32.start [1/16] %v501, 128
        %511 = vxpose.xlu0.b32.cont [2/16] %v503, 128
        %512 = vxpose.xlu0.b32.cont [3/16] %v506, 128
        %513 = vxpose.xlu0.b32.cont [4/16] %v508, 128
        %514 = vxpose.xlu0.b32.cont [5/16] 0.0, 128
        %515 = vxpose.xlu0.b32.cont [6/16] 0.0, 128
        %516 = vxpose.xlu0.b32.cont [7/16] 0.0, 128
        %517 = vxpose.xlu0.b32.cont [8/16] 0.0, 128
        %518 = vxpose.xlu0.b32.cont [9/16] 0.0, 128
        %519 = vxpose.xlu0.b32.cont [10/16] 0.0, 128
        %520 = vxpose.xlu0.b32.cont [11/16] 0.0, 128
        %521 = vxpose.xlu0.b32.cont [12/16] 0.0, 128
        %522 = vxpose.xlu0.b32.cont [13/16] 0.0, 128
        %523 = vxpose.xlu0.b32.cont [14/16] 0.0, 128
        %524 = vxpose.xlu0.b32.cont [15/16] 0.0, 128
        %525 = vxpose.xlu0.b32.end [16/16] 0.0, 128
        %v526 = vpop.trf.xlu0
        %v527 = vpop.trf.xlu0
        %v528 = vpop.trf.xlu0
        %v529 = vpop.trf.xlu0
        %v530 = vpop.trf.xlu0
        %v531 = vpop.trf.xlu0
        %v532 = vpop.trf.xlu0
        %v533 = vpop.trf.xlu0
        %v534 = vpop.trf.xlu0
        %v535 = vpop.trf.xlu0
        %v536 = vpop.trf.xlu0
        %v537 = vpop.trf.xlu0
        %v538 = vpop.trf.xlu0
        %v539 = vpop.trf.xlu0
        %v540 = vpop.trf.xlu0
        %v541 = vpop.trf.xlu0
        %vm542 = vcmask 261120
        %543 = vst.msk [vmem:[%s249] sm:$0xff] %vm542, %v526
        %s544 = sand.u32 %s140, 1
        %s545 = scalar_lea.sflag [#allocation6], %s544
        %s546 = sand.u32 %s140, 1
        %s547 = smul.addr %s546, 8
        %s548 = scalar_lea.vmem [#allocation5], %s547
        // Predicated region
        $region33: #{tpu_custom_call.1} parent=31 // pred_check
          %p549 = pneg %p150
        $region34: #{tpu_custom_call.1} parent=31 // pred_check_branch
          %551 = sbr.rel (%p549) target = $region36
        $region35: #{tpu_custom_call.1} parent=31 // pred_region
          %553 = vsyncadd %s545, 0
          %s554 = sadd.s32 %s36, %s37
          %s555 = smul.addr %s554, 8
          %s556 = scalar_lea.hbm %s5, %s555
          %s558 = sshll.u32 %s548, 4
          %s559 = int_to_ptr.vmem [resolvable:$true] %s558
          %s560 = sshll.u32 %s556, 4
          %s561 = int_to_ptr.hbm [resolvable:$true] %s560
          %563 = dma.vmem_to_hbm [thread:$0]  %s559, 128, %s561, %s545
        $region36: #{tpu_custom_call.1} parent=31 // pred_fallthru
          _
      $region32: #{tpu_custom_call.1} parent=5 // pred_fallthru
        _
      %p564 = scmp.le.s32.totalorder 2, %s27
      // Predicated region
      $region37: #{tpu_custom_call.1} parent=5 // pred_check
        %p565 = pneg %p564
      $region38: #{tpu_custom_call.1} parent=5 // pred_check_branch
        %567 = sbr.rel (%p565) target = $region40
      $region39: #{tpu_custom_call.1} parent=5 // pred_region
        %s568 = ssub.s32 %s27, 2
        // Predicated region
        $region41: #{tpu_custom_call.1} parent=39 // pred_check
          %p569 = pneg %p156
        $region42: #{tpu_custom_call.1} parent=39 // pred_check_branch
          %571 = sbr.rel (%p569) target = $region44
        $region43: #{tpu_custom_call.1} parent=39 // pred_region
          %s572 = sand.u32 %s141, 1
          %s573 = scalar_lea.sflag [#allocation6], %s572
          %s574 = sand.u32 %s141, 1
          %s575 = smul.addr %s574, 8
          %s576 = scalar_lea.vmem [#allocation5], %s575
          %578 = dma.done %s573, 128
        $region44: #{tpu_custom_call.1} parent=39 // pred_fallthru
          _
      $region40: #{tpu_custom_call.1} parent=5 // pred_fallthru
        _
    $region6: #{tpu_custom_call.1} parent=1 // loop_footer
      %s31 = sadd.s32 1, %s27
    $region7: #{tpu_custom_call.1} parent=1 // loop_footer_branch
      %26 = sbr.rel target = $region3
    $region8: #{tpu_custom_call.1} parent=1 // loop_exit
      _
    %579 = vsyncpa [#allocation6], 1
    %s580 = scalar_lea.sflag [#allocation6], 1
    %581 = vsyncpa %s580, 1

</llo_original>
